<compile_context>
chip_gen: v7x
topology: tpu7x:2x2x1
jax: 0.10.0
libtpu: 0.0.40
codegen_flags: <defaults>
</compile_context>

<pallas_src>
import math

import jax
import jax.numpy as jnp
from jax.experimental import pallas as pl
from jax.experimental.pallas import tpu as pltpu


def _mlp_kernel(x_ref, w1_ref, b1_ref, w2_ref, b2_ref, o_ref):
    # Cast the activation row tile to bf16 for the MXU fast path; accumulate in f32.
    x = x_ref[...].astype(jnp.bfloat16)
    h = jnp.dot(x, w1_ref[...], preferred_element_type=jnp.float32)
    h = h + b1_ref[...]
    # Exact (erf-based) GELU in f32 — matches torch.nn.GELU() default.
    h = 0.5 * h * (1.0 + jax.lax.erf(h * (1.0 / math.sqrt(2.0))))
    # Second matmul: back to bf16 inputs, f32 accumulation.
    o = jnp.dot(h.astype(w2_ref.dtype), w2_ref[...], preferred_element_type=jnp.float32)
    o = o + b2_ref[...]
    o_ref[...] = o.astype(o_ref.dtype)


def feature_ir_layer(x, w1, b1, w2, b2, *, tm=256):
    """FeatureIRLayer forward: Linear -> GELU(erf) -> Linear.

    x:  (B, S, in_dim)
    w1: (in_dim, out_dim), b1: (out_dim,)   [weights stored transposed vs. torch]
    w2: (out_dim, out_dim), b2: (out_dim,)
    Returns (B, S, out_dim) in x.dtype.
    """
    B, S, in_dim = x.shape
    out_dim = w1.shape[1]
    M = B * S

    # Adaptive row tiling: large tiles, minimal padding, always a multiple of 8.
    M8 = pl.cdiv(M, 8) * 8
    g = max(1, pl.cdiv(M8, tm))
    tm_eff = max(8, pl.cdiv(pl.cdiv(M8, g), 8) * 8)
    M_pad = g * tm_eff

    x2 = x.reshape(M, in_dim)
    if M_pad != M:
        x2 = jnp.pad(x2, ((0, M_pad - M), (0, 0)))

    # Weights cast once to bf16 (MXU input format); biases kept f32, added post-accum.
    w1_c = w1.astype(jnp.bfloat16)
    w2_c = w2.astype(jnp.bfloat16)
    b1_2d = b1.reshape(1, out_dim).astype(jnp.float32)
    b2_2d = b2.reshape(1, out_dim).astype(jnp.float32)

    BF16, F32 = 2, 4
    x_bytes = jnp.dtype(x.dtype).itemsize
    o_bytes = x_bytes

    # VMEM budget: resident weights (counted double-buffered to be safe) + pipelined
    # row tiles + f32 hidden/accumulator + biases + headroom.
    vmem_needed = (
        2 * (in_dim * out_dim + out_dim * out_dim) * BF16
        + 2 * tm_eff * in_dim * x_bytes
        + 2 * tm_eff * out_dim * o_bytes
        + 2 * tm_eff * out_dim * F32
        + 2 * out_dim * F32
    )
    vmem_limit = int(min(max(vmem_needed * 5 // 4 + (4 << 20), 32 << 20), 100 << 20))

    # Advisory cost hint so XLA schedules around this fused custom call.
    flops = 2 * M_pad * (in_dim * out_dim + out_dim * out_dim)
    bytes_accessed = (
        M_pad * in_dim * x_bytes
        + M_pad * out_dim * o_bytes
        + (in_dim * out_dim + out_dim * out_dim) * BF16
        + 2 * out_dim * F32
    )

    out = pl.pallas_call(
        _mlp_kernel,
        out_shape=jax.ShapeDtypeStruct((M_pad, out_dim), x.dtype),
        grid_spec=pltpu.PrefetchScalarGridSpec(
            num_scalar_prefetch=0,
            grid=(g,),
            in_specs=[
                pl.BlockSpec((tm_eff, in_dim), lambda i: (i, 0)),     # x row tile
                pl.BlockSpec((in_dim, out_dim), lambda i: (0, 0)),    # w1 (grid-invariant)
                pl.BlockSpec((1, out_dim), lambda i: (0, 0)),         # b1
                pl.BlockSpec((out_dim, out_dim), lambda i: (0, 0)),   # w2 (grid-invariant)
                pl.BlockSpec((1, out_dim), lambda i: (0, 0)),         # b2
            ],
            out_specs=pl.BlockSpec((tm_eff, out_dim), lambda i: (i, 0)),
        ),
        compiler_params=pltpu.CompilerParams(
            dimension_semantics=("parallel",),   # row axis shards across TCs on v7x
            vmem_limit_bytes=vmem_limit,
        ),
        cost_estimate=pl.CostEstimate(
            flops=flops,
            transcendentals=M_pad * out_dim,     # erf in the GELU
            bytes_accessed=bytes_accessed,
        ),
    )(x2, w1_c, b1_2d, w2_c, b2_2d)

    if M_pad != M:
        out = out[:M]
    return out.reshape(B, S, out_dim)


def _reference(x, w1, b1, w2, b2):
    h = x @ w1 + b1
    h = 0.5 * h * (1.0 + jax.lax.erf(h / jnp.sqrt(2.0)))
    return h @ w2 + b2


if __name__ == "__main__":
    B, S, in_dim, out_dim = 2, 8, 32, 32

    key = jax.random.PRNGKey(0)
    kx, kw1, kb1, kw2, kb2 = jax.random.split(key, 5)

    x = jax.random.normal(kx, (B, S, in_dim), dtype=jnp.float32)

    # Deterministic synthetic params, shapes per nn.Linear(in_dim, out_dim) /
    # nn.Linear(out_dim, out_dim) (stored transposed: (in, out)).
    lim1 = 1.0 / math.sqrt(in_dim)
    lim2 = 1.0 / math.sqrt(out_dim)
    w1 = jax.random.uniform(kw1, (in_dim, out_dim), jnp.float32, -lim1, lim1)
    b1 = jax.random.uniform(kb1, (out_dim,), jnp.float32, -lim1, lim1)
    w2 = jax.random.uniform(kw2, (out_dim, out_dim), jnp.float32, -lim2, lim2)
    b2 = jax.random.uniform(kb2, (out_dim,), jnp.float32, -lim2, lim2)

    y = feature_ir_layer(x, w1, b1, w2, b2)
    y = jax.block_until_ready(y)

    y_ref = _reference(x, w1, b1, w2, b2)
    assert y.shape == (B, S, out_dim)
    # bf16 MXU inputs with f32 accumulation -> ~1e-2-level deviation vs pure-f32 reference.
    assert jnp.allclose(y, y_ref, atol=5e-2, rtol=5e-2), "mismatch vs reference"

    print("KERNEL_OK")
</pallas_src>

<mosaic_0001>
module attributes {stable_mosaic.version = 11 : i64} {
  func.func @_mlp_kernel(%arg0: i32, %arg1: memref<16x32xf32, #tpu.memory_space<vmem>>, %arg2: memref<32x32xbf16, #tpu.memory_space<vmem>>, %arg3: memref<1x32xf32, #tpu.memory_space<vmem>>, %arg4: memref<32x32xbf16, #tpu.memory_space<vmem>>, %arg5: memref<1x32xf32, #tpu.memory_space<vmem>>, %arg6: memref<16x32xf32, #tpu.memory_space<vmem>>) attributes {dimension_semantics = [#tpu.dimension_semantics<parallel>], iteration_bounds = array<i64: 1>, scalar_prefetch = 0 : i64, scratch_operands = 0 : i64, tpu.core_type = #tpu.core_type<tc>, window_params = [{transform_indices = @transform_0, window_bounds = array<i64: 16, 32>}, {pipeline_mode = #tpu.pipeline_mode<synchronous>, transform_indices = @transform_1, window_bounds = array<i64: 32, 32>}, {pipeline_mode = #tpu.pipeline_mode<synchronous>, transform_indices = @transform_2, window_bounds = array<i64: 1, 32>}, {pipeline_mode = #tpu.pipeline_mode<synchronous>, transform_indices = @transform_3, window_bounds = array<i64: 32, 32>}, {pipeline_mode = #tpu.pipeline_mode<synchronous>, transform_indices = @transform_4, window_bounds = array<i64: 1, 32>}, {transform_indices = @transform_5, window_bounds = array<i64: 16, 32>}]} {
    %c0 = arith.constant 0 : index
    %c0_0 = arith.constant 0 : index
    %0 = vector.load %arg1[%c0, %c0_0] : memref<16x32xf32, #tpu.memory_space<vmem>>, vector<16x32xf32>
    %1 = arith.truncf %0 : vector<16x32xf32> to vector<16x32xbf16>
    %c0_1 = arith.constant 0 : index
    %c0_2 = arith.constant 0 : index
    %2 = vector.load %arg2[%c0_1, %c0_2] : memref<32x32xbf16, #tpu.memory_space<vmem>>, vector<32x32xbf16>
    %cst = arith.constant dense<0.000000e+00> : vector<16x32xf32>
    %3 = tpu.matmul %1, %2, %cst {dimension_numbers = #tpu.dot_dimension_numbers<[1], [0], [0], [1], [0, 0, 1, 1], [], []>} : vector<16x32xbf16>, vector<32x32xbf16>, vector<16x32xf32> -> vector<16x32xf32>
    %c0_3 = arith.constant 0 : index
    %c0_4 = arith.constant 0 : index
    %4 = vector.load %arg3[%c0_3, %c0_4] : memref<1x32xf32, #tpu.memory_space<vmem>>, vector<1x32xf32>
    %5 = vector.broadcast %4 : vector<1x32xf32> to vector<16x32xf32>
    %6 = arith.addf %3, %5 : vector<16x32xf32>
    %cst_5 = arith.constant 5.000000e-01 : f32
    %7 = vector.broadcast %cst_5 : f32 to vector<16x32xf32>
    %8 = arith.mulf %7, %6 : vector<16x32xf32>
    %cst_6 = arith.constant 0.707106769 : f32
    %9 = vector.broadcast %cst_6 : f32 to vector<16x32xf32>
    %10 = arith.mulf %6, %9 : vector<16x32xf32>
    %11 = math.erf %10 : vector<16x32xf32>
    %cst_7 = arith.constant 1.000000e+00 : f32
    %12 = vector.broadcast %cst_7 : f32 to vector<16x32xf32>
    %13 = arith.addf %12, %11 : vector<16x32xf32>
    %14 = arith.mulf %8, %13 : vector<16x32xf32>
    %15 = arith.truncf %14 : vector<16x32xf32> to vector<16x32xbf16>
    %c0_8 = arith.constant 0 : index
    %c0_9 = arith.constant 0 : index
    %16 = vector.load %arg4[%c0_8, %c0_9] : memref<32x32xbf16, #tpu.memory_space<vmem>>, vector<32x32xbf16>
    %cst_10 = arith.constant dense<0.000000e+00> : vector<16x32xf32>
    %17 = tpu.matmul %15, %16, %cst_10 {dimension_numbers = #tpu.dot_dimension_numbers<[1], [0], [0], [1], [0, 0, 1, 1], [], []>} : vector<16x32xbf16>, vector<32x32xbf16>, vector<16x32xf32> -> vector<16x32xf32>
    %c0_11 = arith.constant 0 : index
    %c0_12 = arith.constant 0 : index
    %18 = vector.load %arg5[%c0_11, %c0_12] : memref<1x32xf32, #tpu.memory_space<vmem>>, vector<1x32xf32>
    %19 = vector.broadcast %18 : vector<1x32xf32> to vector<16x32xf32>
    %20 = arith.addf %17, %19 : vector<16x32xf32>
    %c0_13 = arith.constant 0 : index
    %c0_14 = arith.constant 0 : index
    %21 = vector.load %arg6[%c0_13, %c0_14] : memref<16x32xf32, #tpu.memory_space<vmem>>, vector<16x32xf32>
    tpu.vector_store %arg6[%c0_13, %c0_14], %20 {strides = array<i32>} : memref<16x32xf32, #tpu.memory_space<vmem>>, vector<16x32xf32>,
    return
  }
  func.func @transform_0(%arg0: i32) -> (i32, i32) {
    %c0_i32 = arith.constant 0 : i32
    %c0_i32_0 = arith.constant 0 : i32
    return %arg0, %c0_i32 : i32, i32
  }
  func.func @transform_1(%arg0: i32) -> (i32, i32) {
    %c0_i32 = arith.constant 0 : i32
    %c0_i32_0 = arith.constant 0 : i32
    %c0_i32_1 = arith.constant 0 : i32
    return %c0_i32, %c0_i32_0 : i32, i32
  }
  func.func @transform_2(%arg0: i32) -> (i32, i32) {
    %c0_i32 = arith.constant 0 : i32
    %c0_i32_0 = arith.constant 0 : i32
    %c0_i32_1 = arith.constant 0 : i32
    return %c0_i32, %c0_i32_0 : i32, i32
  }
  func.func @transform_3(%arg0: i32) -> (i32, i32) {
    %c0_i32 = arith.constant 0 : i32
    %c0_i32_0 = arith.constant 0 : i32
    %c0_i32_1 = arith.constant 0 : i32
    return %c0_i32, %c0_i32_0 : i32, i32
  }
  func.func @transform_4(%arg0: i32) -> (i32, i32) {
    %c0_i32 = arith.constant 0 : i32
    %c0_i32_0 = arith.constant 0 : i32
    %c0_i32_1 = arith.constant 0 : i32
    return %c0_i32, %c0_i32_0 : i32, i32
  }
  func.func @transform_5(%arg0: i32) -> (i32, i32) {
    %c0_i32 = arith.constant 0 : i32
    %c0_i32_0 = arith.constant 0 : i32
    return %arg0, %c0_i32 : i32, i32
  }
}

</mosaic_0001>

<llo_original>
// kernel: tpu_custom_call.1
$region0: #{tpu_custom_call.1}
  #allocation0 [shape = 'u32[]', space=smem, size = 0x4, offset = 0x4, fixed_abs, tag = 'smem constant byte address 0x4 - core index']
  #allocation1 [shape = 'u32[144,128]{1,0:T(1,128)}', space=vmem, size = 0x12000, scoped, tag = 'internal scratch']
  %s0 = inlined_call_operand.hbm [shape: f32[16,32], index: 0, kind: input, shape index: {}]
  %s1 = inlined_call_operand.hbm [shape: bf16[32,32], index: 1, kind: input, shape index: {}]
  %s2 = inlined_call_operand.vmem [shape: f32[1,32], index: 2, kind: input, shape index: {}]
  %s3 = inlined_call_operand.hbm [shape: bf16[32,32], index: 3, kind: input, shape index: {}]
  %s4 = inlined_call_operand.vmem [shape: f32[1,32], index: 4, kind: input, shape index: {}]
  %s5 = inlined_call_operand.hbm [shape: f32[16,32], index: 5, kind: output, shape index: {}]
  %s6 = sld [smem:[#allocation0]]
  $region42: #{tpu_custom_call.1} parent=0
    _
  %s8 = ssub.s32 1, %s6
  %s9 = scalar_select 0, %s8, %s6
  $region1: #{tpu_custom_call.1} parent=0
    #allocation2 [shape = 'u8[8192]{0}', space=vmem, size = 0x2000, scoped, tag = 'input window, operand 0, single buffered']
    #allocation3 [shape = 's32[1]{0}', space=sflag, size = 0x4, scoped, tag = 'scoped memory for tpu_custom_call.1']
    #allocation4 [shape = 's32[1]{0}', space=sflag, size = 0x4, scoped, tag = 'scoped memory for tpu_custom_call.1']
    #allocation5 [shape = 'u8[8192]{0}', space=vmem, size = 0x2000, scoped, tag = 'input window, operand 1, single buffered']
    #allocation6 [shape = 's32[1]{0}', space=sflag, size = 0x4, scoped, tag = 'scoped memory for tpu_custom_call.1']
    #allocation7 [shape = 'u8[8192]{0}', space=vmem, size = 0x2000, scoped, tag = 'input window, operand 3, single buffered']
    #allocation8 [shape = 'u8[8192]{0}', space=vmem, size = 0x2000, scoped, tag = 'output window, operand 0, single buffered']
    %10 = vsyncpa [#allocation3], 0
    %11 = vsyncpa [#allocation6], 0
    %12 = vsyncpa [#allocation4], 0
    // Predicated region
    $region2: #{tpu_custom_call.1} parent=1 // pred_check
      _
    $region3: #{tpu_custom_call.1} parent=1 // pred_check_branch
      %14 = sbr.rel (0) target = $region5
    $region4: #{tpu_custom_call.1} parent=1 // pred_region
      %s16 = ssub.s32 256, 256
      %17 = vsyncadd [#allocation3], %s16
      %s18 = sshll.u32 [#allocation2], 4
      %s19 = int_to_ptr.vmem [resolvable:$true] %s18
      %24 = dma.hbm_to_vmem [thread:$0]  %s0, 256, %s19, [#allocation3], 128, 128, 8
    $region5: #{tpu_custom_call.1} parent=1 // pred_fallthru
      _
    // Predicated region
    $region6: #{tpu_custom_call.1} parent=1 // pred_check
      _
    $region7: #{tpu_custom_call.1} parent=1 // pred_check_branch
      %26 = sbr.rel (0) target = $region9
    $region8: #{tpu_custom_call.1} parent=1 // pred_region
      %s28 = ssub.s32 256, 256
      %29 = vsyncadd [#allocation6], %s28
      %s30 = sshll.u32 [#allocation5], 4
      %s31 = int_to_ptr.vmem [resolvable:$true] %s30
      %36 = dma.hbm_to_vmem [thread:$0]  %s1, 256, %s31, [#allocation6], 64, 64, 4
    $region9: #{tpu_custom_call.1} parent=1 // pred_fallthru
      _
    // Predicated region
    $region10: #{tpu_custom_call.1} parent=1 // pred_check
      _
    $region11: #{tpu_custom_call.1} parent=1 // pred_check_branch
      %38 = sbr.rel (0) target = $region13
    $region12: #{tpu_custom_call.1} parent=1 // pred_region
      _
    $region13: #{tpu_custom_call.1} parent=1 // pred_fallthru
      _
    // Predicated region
    $region14: #{tpu_custom_call.1} parent=1 // pred_check
      _
    $region15: #{tpu_custom_call.1} parent=1 // pred_check_branch
      %40 = sbr.rel (0) target = $region17
    $region16: #{tpu_custom_call.1} parent=1 // pred_region
      %s42 = ssub.s32 256, 256
      %43 = vsyncadd [#allocation6], %s42
      %s44 = sshll.u32 [#allocation7], 4
      %s45 = int_to_ptr.vmem [resolvable:$true] %s44
      %50 = dma.hbm_to_vmem [thread:$0]  %s3, 256, %s45, [#allocation6], 64, 64, 4
    $region17: #{tpu_custom_call.1} parent=1 // pred_fallthru
      _
    // Predicated region
    $region18: #{tpu_custom_call.1} parent=1 // pred_check
      _
    $region19: #{tpu_custom_call.1} parent=1 // pred_check_branch
      %52 = sbr.rel (0) target = $region21
    $region20: #{tpu_custom_call.1} parent=1 // pred_region
      _
    $region21: #{tpu_custom_call.1} parent=1 // pred_fallthru
      _
    // Predicated region
    $region22: #{tpu_custom_call.1} parent=1 // pred_check
      _
    $region23: #{tpu_custom_call.1} parent=1 // pred_check_branch
      %54 = sbr.rel (0) target = $region25
    $region24: #{tpu_custom_call.1} parent=1 // pred_region
      %55 = dma.done [#allocation3], 256
    $region25: #{tpu_custom_call.1} parent=1 // pred_fallthru
      _
    // Predicated region
    $region26: #{tpu_custom_call.1} parent=1 // pred_check
      _
    $region27: #{tpu_custom_call.1} parent=1 // pred_check_branch
      %57 = sbr.rel (0) target = $region29
    $region28: #{tpu_custom_call.1} parent=1 // pred_region
      %58 = dma.done [#allocation6], 256
    $region29: #{tpu_custom_call.1} parent=1 // pred_fallthru
      _
    // Predicated region
    $region30: #{tpu_custom_call.1} parent=1 // pred_check
      _
    $region31: #{tpu_custom_call.1} parent=1 // pred_check_branch
      %60 = sbr.rel (0) target = $region33
    $region32: #{tpu_custom_call.1} parent=1 // pred_region
      %61 = dma.done [#allocation6], 256
    $region33: #{tpu_custom_call.1} parent=1 // pred_fallthru
      _
    %v63 = vld [vmem:[#allocation2] sm:$0xff]
    %v64 = vld [vmem:[#allocation2 + $0x8] sm:$0xff]
    %v65 = vpack.c.bf16 %v64, %v63
    %v66 = vld [vmem:[#allocation5] sm:$0xf]
    %v67 = vld [vmem:[#allocation5 + $0x4] sm:$0xf]
    %v68 = vld [vmem:[#allocation5 + $0x8] sm:$0xf]
    %v69 = vld [vmem:[#allocation5 + $0xc] sm:$0xf]
    %v70 = vld [vmem:[%s2] sm:$0x1]
    %v72 = vlaneseq
    %v73 = vshrl.u32 %v72, 7
    %v74 = vsub.s32 0, %v73
    %v75 = vrot.slane %v70, %v74
    %v81 = vunpack.c.l.b16 %v66
    %v82 = vunpack.c.l.b16 %v67
    %v83 = vunpack.c.l.b16 %v68
    %v84 = vunpack.c.l.b16 %v69
    %v85 = vpack.c.b16 %v82, %v81
    %v86 = vpack.c.b16 %v84, %v83
    %vm89 = vcmask 261120
    %v91 = vsel %vm89, %v65, 0
    %93 = vmatprep.subr.bf16.mxu0 0
    %94 = vmatpush1.bf16.msra.mxu0 %v85
    %95 = vmatprep.subr.bf16.mxu0 0
    %96 = vmatpush1.bf16.msra.mxu0 %v86
    %97 = vmatprep.subr.bf16.mxu0 0
    %98 = vmatpush1.bf16.msra.mxu0 0
    %99 = vmatprep.subr.bf16.mxu0 0
    %100 = vmatpush1.bf16.msra.mxu0 0
    %101 = vmatprep.subr.bf16.mxu0 0
    %102 = vmatpush1.bf16.msra.mxu0 0
    %103 = vmatprep.subr.bf16.mxu0 0
    %104 = vmatpush1.bf16.msra.mxu0 0
    %105 = vmatprep.subr.bf16.mxu0 0
    %106 = vmatpush1.bf16.msra.mxu0 0
    %107 = vmatprep.subr.bf16.mxu0 0
    %108 = vmatpush1.bf16.msra.mxu0 0
    %109 = vmatprep.subr.bf16.mxu0 0
    %110 = vmatpush1.bf16.msra.mxu0 0
    %111 = vmatprep.subr.bf16.mxu0 0
    %112 = vmatpush1.bf16.msra.mxu0 0
    %113 = vmatprep.subr.bf16.mxu0 0
    %114 = vmatpush1.bf16.msra.mxu0 0
    %115 = vmatprep.subr.bf16.mxu0 0
    %116 = vmatpush1.bf16.msra.mxu0 0
    %117 = vmatprep.subr.bf16.mxu0 0
    %118 = vmatpush1.bf16.msra.mxu0 0
    %119 = vmatprep.subr.bf16.mxu0 0
    %120 = vmatpush1.bf16.msra.mxu0 0
    %121 = vmatprep.subr.bf16.mxu0 0
    %122 = vmatpush1.bf16.msra.mxu0 0
    %123 = vmatprep.subr.bf16.mxu0 0
    %124 = vmatpush1.bf16.msra.mxu0 0
    %125 = vmatprep.mubr.bf16.mxu0 0
    %126 = vmatmul.mubr.bf16.gmra.mrb[0].mxu0 %v91
    %v127 = vpop.f32.mrb[0].mxu0
    %v128 = vadd.f32 %v75, %v127
    %v129 = vpop.f32.mrb[0].mxu0
    %v130 = vpop.f32.mrb[0].mxu0
    %v131 = vadd.f32 %v75, %v130
    %v132 = vpop.f32.mrb[0].mxu0
    %133 = vdwg.mxu0
    %v134 = vmul.f32 %v128, 0.5
    %v135 = vmul.f32 %v131, 0.5
    %v136 = vmul.f32 %v128, 0.70710677
    %v137 = vmul.f32 %v131, 0.70710677
    %v138 = verf.f32.pop %v136
    %v139 = verf.f32.pop %v137
    %v140 = vadd.f32 %v138, 1.0
    %v141 = vadd.f32 %v139, 1.0
    %v142 = vmul.f32 %v134, %v140
    %v143 = vmul.f32 %v135, %v141
    %v144 = vpack.c.bf16 %v143, %v142
    %v145 = vld [vmem:[#allocation7] sm:$0xf]
    %v146 = vld [vmem:[#allocation7 + $0x4] sm:$0xf]
    %v147 = vld [vmem:[#allocation7 + $0x8] sm:$0xf]
    %v148 = vld [vmem:[#allocation7 + $0xc] sm:$0xf]
    %v149 = vld [vmem:[%s4] sm:$0x1]
    %v151 = vlaneseq
    %v152 = vshrl.u32 %v151, 7
    %v153 = vsub.s32 0, %v152
    %v154 = vrot.slane %v149, %v153
    %v160 = vunpack.c.l.b16 %v145
    %v161 = vunpack.c.l.b16 %v146
    %v162 = vunpack.c.l.b16 %v147
    %v163 = vunpack.c.l.b16 %v148
    %v164 = vpack.c.b16 %v161, %v160
    %v165 = vpack.c.b16 %v163, %v162
    %v169 = vsel %vm89, %v144, 0
    %171 = vmatprep.subr.bf16.mxu0 0
    %172 = vmatpush1.bf16.msra.mxu0 %v164
    %173 = vmatprep.subr.bf16.mxu0 0
    %174 = vmatpush1.bf16.msra.mxu0 %v165
    %175 = vmatprep.subr.bf16.mxu0 0
    %176 = vmatpush1.bf16.msra.mxu0 0
    %177 = vmatprep.subr.bf16.mxu0 0
    %178 = vmatpush1.bf16.msra.mxu0 0
    %179 = vmatprep.subr.bf16.mxu0 0
    %180 = vmatpush1.bf16.msra.mxu0 0
    %181 = vmatprep.subr.bf16.mxu0 0
    %182 = vmatpush1.bf16.msra.mxu0 0
    %183 = vmatprep.subr.bf16.mxu0 0
    %184 = vmatpush1.bf16.msra.mxu0 0
    %185 = vmatprep.subr.bf16.mxu0 0
    %186 = vmatpush1.bf16.msra.mxu0 0
    %187 = vmatprep.subr.bf16.mxu0 0
    %188 = vmatpush1.bf16.msra.mxu0 0
    %189 = vmatprep.subr.bf16.mxu0 0
    %190 = vmatpush1.bf16.msra.mxu0 0
    %191 = vmatprep.subr.bf16.mxu0 0
    %192 = vmatpush1.bf16.msra.mxu0 0
    %193 = vmatprep.subr.bf16.mxu0 0
    %194 = vmatpush1.bf16.msra.mxu0 0
    %195 = vmatprep.subr.bf16.mxu0 0
    %196 = vmatpush1.bf16.msra.mxu0 0
    %197 = vmatprep.subr.bf16.mxu0 0
    %198 = vmatpush1.bf16.msra.mxu0 0
    %199 = vmatprep.subr.bf16.mxu0 0
    %200 = vmatpush1.bf16.msra.mxu0 0
    %201 = vmatprep.subr.bf16.mxu0 0
    %202 = vmatpush1.bf16.msra.mxu0 0
    %203 = vmatprep.mubr.bf16.mxu0 0
    %204 = vmatmul.mubr.bf16.gmra.mrb[0].mxu0 %v169
    %v205 = vpop.f32.mrb[0].mxu0
    %v206 = vadd.f32 %v154, %v205
    %v207 = vpop.f32.mrb[0].mxu0
    %v208 = vpop.f32.mrb[0].mxu0
    %v209 = vadd.f32 %v154, %v208
    %v210 = vpop.f32.mrb[0].mxu0
    %211 = vdwg.mxu0
    %212 = vst.msk [vmem:[#allocation8] sm:$0xff] %vm89, %v206
    %213 = vst.msk [vmem:[#allocation8 + $0x8] sm:$0xff] %vm89, %v209
    // Predicated region
    $region34: #{tpu_custom_call.1} parent=1 // pred_check
      _
    $region35: #{tpu_custom_call.1} parent=1 // pred_check_branch
      %215 = sbr.rel (0) target = $region37
    $region36: #{tpu_custom_call.1} parent=1 // pred_region
      %s217 = ssub.s32 256, 256
      %218 = vsyncadd [#allocation4], %s217
      %s219 = sshll.u32 [#allocation8], 4
      %s220 = int_to_ptr.vmem [resolvable:$true] %s219
      %225 = dma.vmem_to_hbm [thread:$0]  %s220, 256, %s5, [#allocation4], 128, 128, 8
    $region37: #{tpu_custom_call.1} parent=1 // pred_fallthru
      _
    // Predicated region
    $region38: #{tpu_custom_call.1} parent=1 // pred_check
      _
    $region39: #{tpu_custom_call.1} parent=1 // pred_check_branch
      %227 = sbr.rel (0) target = $region41
    $region40: #{tpu_custom_call.1} parent=1 // pred_region
      %228 = dma.done [#allocation4], 256
    $region41: #{tpu_custom_call.1} parent=1 // pred_fallthru
      _
    %229 = vsyncpa [#allocation3], 1
    %230 = vsyncpa [#allocation6], 1
    %231 = vsyncpa [#allocation4], 1

</llo_original>
